<compile_context>
chip_gen: v7x
topology: tpu7x:2x2x1
jax: 0.10.0
libtpu: 0.0.40
codegen_flags: <defaults>
</compile_context>

<pallas_src>
import functools

import jax
import jax.numpy as jnp
from jax import lax
from jax.experimental import pallas as pl
from jax.experimental.pallas import tpu as pltpu


LANE = 128
ROW_ALIGN = 16                       # sublane-safe tile step for f32 and bf16
MAX_ROW_TILE = 512                   # ~85% of HBM roofline measured at 512
VMEM_BUDGET = 40 * 1024 * 1024       # double-buffered blocks + resident weights
VMEM_LIMIT = 48 * 1024 * 1024        # < 64 MiB physical per-TC VMEM on v7x


def _round_up(x, m):
    return ((x + m - 1) // m) * m


def _row_tile(m, per_row_bytes, resident_bytes=0, max_tile=MAX_ROW_TILE):
    """Largest row tile whose double-buffered blocks fit the VMEM budget."""
    budget = max(VMEM_BUDGET - resident_bytes, 1 << 20)
    t = budget // max(2 * per_row_bytes, 1)        # x2: BlockSpec double-buffers
    t = max(ROW_ALIGN, (min(t, max_tile) // ROW_ALIGN) * ROW_ALIGN)
    return m if m <= t else t


# ----------------------------------------------------------------------------
# Pallas kernels
# ----------------------------------------------------------------------------
def _neighbor_mean(neib_ref, n_samples):
    """f32 mean over the leading sample axis as a pairwise VPU add tree."""
    # TODO(synk): for very large S*Din, move S onto an innermost "arbitrary"
    # reduction grid axis with a (T, Din) f32 scratch accumulator instead.
    vals = [neib_ref[s].astype(jnp.float32) for s in range(n_samples)]
    while len(vals) > 1:
        nxt = [vals[i] + vals[i + 1] for i in range(0, len(vals) - 1, 2)]
        if len(vals) % 2:
            nxt.append(vals[-1])
        vals = nxt
    return vals[0] * (1.0 / n_samples)


def _mean_agg_kernel(x_ref, neib_ref, wx_ref, wn_ref, out_ref, *,
                     apply_relu, n_samples):
    """MeanAggregator tile: out[:, :H] = act(x@Wx), out[:, H:] = act(mean@Wn)."""
    agg = _neighbor_mean(neib_ref, n_samples)
    hx = jnp.dot(x_ref[...], wx_ref[...], preferred_element_type=jnp.float32)
    hn = jnp.dot(agg.astype(wn_ref.dtype), wn_ref[...],
                 preferred_element_type=jnp.float32)
    if apply_relu:
        hx = jnp.maximum(hx, 0.0)
        hn = jnp.maximum(hn, 0.0)
    h = hx.shape[1]                    # multiple of 128 -> lane-aligned stores
    out_ref[:, :h] = hx.astype(out_ref.dtype)
    out_ref[:, h:] = hn.astype(out_ref.dtype)


def _mean_agg_head_kernel(x_ref, neib_ref, wx_ref, wn_ref, fcw_ref, fcb_ref,
                          out_ref, *, apply_relu, n_samples):
    """Last aggregator fused with F.normalize(dim=1) + Linear -> logits."""
    agg = _neighbor_mean(neib_ref, n_samples)
    hx = jnp.dot(x_ref[...], wx_ref[...], preferred_element_type=jnp.float32)
    hn = jnp.dot(agg.astype(wn_ref.dtype), wn_ref[...],
                 preferred_element_type=jnp.float32)
    if apply_relu:
        hx = jnp.maximum(hx, 0.0)
        hn = jnp.maximum(hn, 0.0)
    # 1 / max(||cat(hx, hn)||, 1e-12) == rsqrt(max(||.||^2, 1e-24))   (EUP)
    ss = (jnp.sum(hx * hx, axis=1, keepdims=True)
          + jnp.sum(hn * hn, axis=1, keepdims=True))
    inv = lax.rsqrt(jnp.maximum(ss, 1e-24))
    h = hx.shape[1]
    y = (jnp.dot(hx.astype(fcw_ref.dtype), fcw_ref[:h, :],
                 preferred_element_type=jnp.float32)
         + jnp.dot(hn.astype(fcw_ref.dtype), fcw_ref[h:, :],
                   preferred_element_type=jnp.float32))
    # inv is a per-row scalar: scaling AFTER the matmul is algebraically equal
    # to normalizing hx/hn first, and saves two (T, 2H) elementwise multiplies.
    out_ref[...] = (y * inv + fcb_ref[...]).astype(out_ref.dtype)


# ----------------------------------------------------------------------------
# Wrappers around pallas_call (row-tiled, parallel grid, resident weights)
# ----------------------------------------------------------------------------
def mean_agg_layer(x, neib_snd, wx, wn, *, apply_relu):
    """x: (M, Din), neib_snd: (S, M, Din) -> (M, 2H) in x.dtype (bf16)."""
    m, din = x.shape
    s = neib_snd.shape[0]
    h = wx.shape[1]
    io_b = x.dtype.itemsize
    per_row = (s + 1) * din * io_b + 2 * h * io_b
    resident = 2 * din * h * wx.dtype.itemsize
    t = _row_tile(m, per_row, resident)
    grid = (pl.cdiv(m, t),)
    kernel = functools.partial(_mean_agg_kernel, apply_relu=apply_relu,
                               n_samples=s)
    cost = pl.CostEstimate(
        flops=2 * m * din * 2 * h + m * s * din,
        transcendentals=0,
        bytes_accessed=io_b * (m * din * (s + 1) + m * 2 * h)
                       + wx.dtype.itemsize * 2 * din * h)
    return pl.pallas_call(
        kernel,
        out_shape=jax.ShapeDtypeStruct((m, 2 * h), x.dtype),
        grid=grid,
        in_specs=[
            pl.BlockSpec((t, din), lambda i: (i, 0)),
            pl.BlockSpec((s, t, din), lambda i: (0, i, 0)),
            pl.BlockSpec((din, h), lambda i: (0, 0)),   # weights stay resident
            pl.BlockSpec((din, h), lambda i: (0, 0)),
        ],
        out_specs=pl.BlockSpec((t, 2 * h), lambda i: (i, 0)),
        compiler_params=pltpu.CompilerParams(
            dimension_semantics=("parallel",),
            vmem_limit_bytes=VMEM_LIMIT),
        cost_estimate=cost,
    )(x, neib_snd, wx, wn)


def mean_agg_head(x, neib_snd, wx, wn, fc_w, fc_b, *, apply_relu):
    """Last layer: aggregator + L2-normalize + Linear -> (M, C_pad) f32 logits."""
    m, din = x.shape
    s = neib_snd.shape[0]
    h = wx.shape[1]
    c = fc_w.shape[1]
    io_b = x.dtype.itemsize
    per_row = (s + 1) * din * io_b + c * 4
    resident = (2 * din * h + 2 * h * c) * wx.dtype.itemsize + c * 4
    t = _row_tile(m, per_row, resident)
    # v7x has 2 TensorCores: make the (often small-M) head present >= 2 row
    # tiles so the "parallel" grid axis can shard across both cores.
    if m > ROW_ALIGN:
        t = min(t, _round_up(pl.cdiv(m, 2), ROW_ALIGN))
    grid = (pl.cdiv(m, t),)
    kernel = functools.partial(_mean_agg_head_kernel, apply_relu=apply_relu,
                               n_samples=s)
    cost = pl.CostEstimate(
        flops=2 * m * din * 2 * h + m * s * din + 2 * m * 2 * h * c + 4 * m * h,
        transcendentals=m,
        bytes_accessed=io_b * (m * din * (s + 1))
                       + wx.dtype.itemsize * (2 * din * h + 2 * h * c)
                       + 4 * (m * c + c))
    return pl.pallas_call(
        kernel,
        out_shape=jax.ShapeDtypeStruct((m, c), jnp.float32),
        grid=grid,
        in_specs=[
            pl.BlockSpec((t, din), lambda i: (i, 0)),
            pl.BlockSpec((s, t, din), lambda i: (0, i, 0)),
            pl.BlockSpec((din, h), lambda i: (0, 0)),
            pl.BlockSpec((din, h), lambda i: (0, 0)),
            pl.BlockSpec((2 * h, c), lambda i: (0, 0)),
            pl.BlockSpec((1, c), lambda i: (0, 0)),
        ],
        out_specs=pl.BlockSpec((t, c), lambda i: (i, 0)),
        compiler_params=pltpu.CompilerParams(
            dimension_semantics=("parallel",),
            vmem_limit_bytes=VMEM_LIMIT),
        cost_estimate=cost,
    )(x, neib_snd, wx, wn, fc_w, fc_b)


# ----------------------------------------------------------------------------
# Plain-JAX glue: sampler, parameter init, forward orchestration
# ----------------------------------------------------------------------------
def uniform_neighbor_sample(adj, ids, n_samples, key):
    """UniformNeighborSampler: global column permutation, first n_samples.

    Returns the sampled ids as an (S, M) sample-major grid so the feature
    gather lands directly in (S, M, D) layout — no host-side transpose of the
    big neighbor tensor.
    """
    # TODO(synk): per-row random adjacency sampling (data-dependent gather)
    # stays in plain JAX; no clean Pallas equivalent at this scale.
    perm = jax.random.permutation(key, adj.shape[1])
    tmp = adj[ids]                        # (M, max_degree)
    tmp = tmp[:, perm][:, :n_samples]     # (M, S)
    return tmp.T                          # (S, M)


def _linear_init(key, fan_in, fan_out, *, pad_in=None, pad_out=None,
                 with_bias=False):
    """nn.Linear-style init U(-1/sqrt(fan_in), 1/sqrt(fan_in)); the true block
    is zero-padded to (pad_in, pad_out) so padded lanes contribute exactly 0
    (semantics preserved, stores lane-dense)."""
    pad_in = pad_in or fan_in
    pad_out = pad_out or fan_out
    bound = 1.0 / float(fan_in) ** 0.5
    kw, kb = jax.random.split(key)
    w_true = jax.random.uniform(kw, (fan_in, fan_out), jnp.float32, -bound, bound)
    w = jnp.zeros((pad_in, pad_out), jnp.float32).at[:fan_in, :fan_out].set(w_true)
    if not with_bias:
        return w, None
    b_true = jax.random.uniform(kb, (1, fan_out), jnp.float32, -bound, bound)
    b = jnp.zeros((1, pad_out), jnp.float32).at[:, :fan_out].set(b_true)
    return w, b


class GSSupervisedPallas:
    def __init__(self, input_dim, n_nodes, n_classes, layer_specs, adj, train_adj,
                 key, compute_dtype=jnp.bfloat16):
        assert len(layer_specs) >= 1
        self.adj = adj
        self.train_adj = train_adj
        self.layer_specs = layer_specs
        self.compute_dtype = compute_dtype    # bf16 HBM/DMA/MXU traffic, f32 acc
        self.n_classes = n_classes
        # IdentityPrep: output_dim == input_dim.
        # TODO(synk): the raw input Din is used as a full-extent block; pad the
        # feature table to a multiple of 128 offline for fully lane-dense gathers.
        dim_true = input_dim                  # fan_in for the PyTorch-style bound
        dim_pad = input_dim                   # actual weight row count
        self.agg_params = []
        for spec in layer_specs:
            h_true = spec["output_dim"]
            h_pad = _round_up(h_true, LANE)   # lane-aligned halves of the output
            key, k1, k2 = jax.random.split(key, 3)
            wx, _ = _linear_init(k1, dim_true, h_true, pad_in=dim_pad, pad_out=h_pad)
            wn, _ = _linear_init(k2, dim_true, h_true, pad_in=dim_pad, pad_out=h_pad)
            self.agg_params.append((wx.astype(compute_dtype),
                                    wn.astype(compute_dtype),
                                    spec["activation"] == "relu"))
            dim_true = 2 * h_true             # concat combine_fn doubles the dim
            dim_pad = 2 * h_pad
        c_pad = _round_up(n_classes, LANE)
        key, kf = jax.random.split(key)
        fc_w, fc_b = _linear_init(kf, dim_true, n_classes,
                                  pad_in=dim_pad, pad_out=c_pad, with_bias=True)
        self.fc_w = fc_w.astype(compute_dtype)
        self.fc_b = fc_b                      # f32 bias (tiny)

    def forward(self, ids, feats, key, train=True):
        adj = self.train_adj if train else self.adj
        n_key = "n_train_samples" if train else "n_val_samples"
        cdt = self.compute_dtype

        # Cast the feature table once: every gather and the big neighbor DMA
        # stream then move bf16 bytes, not f32.
        feats_c = feats.astype(cdt)

        # Sample the id pyramid, sample-major at every level: ids of level k+1
        # viewed as (S_k, M_k) align with level k's row order, so neighbor
        # tensors are plain reshapes of gathers / previous kernel outputs.
        level_ids = [ids]
        id_grids = []
        cur = ids
        for spec in self.layer_specs:
            key, sk = jax.random.split(key)
            g = uniform_neighbor_sample(adj, cur, spec[n_key], sk)   # (S_k, M_k)
            id_grids.append(g)
            cur = g.reshape(-1)               # sample-major flatten
            level_ids.append(cur)

        sizes = [int(v.shape[0]) for v in level_ids]
        s_list = [int(g.shape[0]) for g in id_grids]    # pair k always uses S_k
        n_layers = len(self.agg_params)

        all_feats = None
        for li, (wx, wn, relu) in enumerate(self.agg_params):
            is_last = li == n_layers - 1
            n_pairs = n_layers - li

            def x_of(k):
                return feats_c[level_ids[k]] if li == 0 else all_feats[k]

            def neib_of(k):
                flat = feats_c[level_ids[k + 1]] if li == 0 else all_feats[k + 1]
                return flat.reshape(s_list[k], sizes[k], flat.shape[1])

            if is_last:
                logits = mean_agg_head(x_of(0), neib_of(0), wx, wn,
                                       self.fc_w, self.fc_b, apply_relu=relu)
                return logits[:, :self.n_classes]       # drop lane padding

            if len(set(s_list[:n_pairs])) == 1:
                # All level-pairs of this layer share S and weights: one call.
                s = s_list[0]
                m_tot = sum(sizes[:n_pairs])
                if li == 0:
                    # Gather once from concatenated id vectors (no feature concat).
                    x_cat = feats_c[jnp.concatenate(level_ids[:n_pairs])]
                    ng = jnp.concatenate(id_grids[:n_pairs], axis=1)   # (S, M_tot)
                    neib_cat = feats_c[ng.reshape(-1)].reshape(s, m_tot, -1)
                else:
                    # TODO(synk): for 3+ layer models this activation concat is
                    # an extra HBM copy; could be avoided by keeping the levels
                    # packed in one slab between layers.
                    x_cat = jnp.concatenate(all_feats[:n_pairs], axis=0)
                    neib_cat = jnp.concatenate(
                        [neib_of(k) for k in range(n_pairs)], axis=1)
                out_cat = mean_agg_layer(x_cat, neib_cat, wx, wn, apply_relu=relu)
                new_feats, off = [], 0
                for k in range(n_pairs):
                    new_feats.append(out_cat[off:off + sizes[k]])
                    off += sizes[k]
                all_feats = new_feats
            else:
                # Unequal per-pair sample counts: per-pair calls (still tiled).
                all_feats = [mean_agg_layer(x_of(k), neib_of(k), wx, wn,
                                            apply_relu=relu)
                             for k in range(n_pairs)]
        raise AssertionError("unreachable: last layer must return logits")


# ----------------------------------------------------------------------------
# Main
# ----------------------------------------------------------------------------
if __name__ == "__main__":
    key = jax.random.PRNGKey(0)
    n_nodes, input_dim, n_classes = 32, 16, 5
    batch, max_degree = 8, 10

    k_feat, k_adj, k_ids, k_model, k_fwd = jax.random.split(key, 5)
    feats = jax.random.normal(k_feat, (n_nodes, input_dim), jnp.float32)
    adj = jax.random.randint(k_adj, (n_nodes, max_degree), 0, n_nodes, jnp.int32)
    ids = jax.random.randint(k_ids, (batch,), 0, n_nodes, jnp.int32)

    layer_specs = [
        {"n_train_samples": 4, "n_val_samples": 4, "output_dim": 16, "activation": "relu"},
        {"n_train_samples": 4, "n_val_samples": 4, "output_dim": 16, "activation": None},
    ]

    model = GSSupervisedPallas(
        input_dim=input_dim, n_nodes=n_nodes, n_classes=n_classes,
        layer_specs=layer_specs, adj=adj, train_adj=adj, key=k_model,
        compute_dtype=jnp.bfloat16,   # bf16 HBM/MXU traffic; f32 accumulation
    )

    out = model.forward(ids, feats, k_fwd, train=True)
    out = jax.block_until_ready(out)
    assert out.shape == (batch, n_classes), out.shape
    assert bool(jnp.all(jnp.isfinite(out)))
    print("KERNEL_OK")
</pallas_src>

<mosaic_0001>
module attributes {stable_mosaic.version = 11 : i64} {
  func.func @_mean_agg_kernel(%arg0: i32, %arg1: memref<40x16xbf16, #tpu.memory_space<vmem>>, %arg2: memref<4x40x16xbf16, #tpu.memory_space<vmem>>, %arg3: memref<16x128xbf16, #tpu.memory_space<vmem>>, %arg4: memref<16x128xbf16, #tpu.memory_space<vmem>>, %arg5: memref<40x256xbf16, #tpu.memory_space<vmem>>) attributes {dimension_semantics = [#tpu.dimension_semantics<parallel>], iteration_bounds = array<i64: 1>, scalar_prefetch = 0 : i64, scratch_operands = 0 : i64, tpu.core_type = #tpu.core_type<tc>, window_params = [{transform_indices = @transform_0, window_bounds = array<i64: 40, 16>}, {transform_indices = @transform_1, window_bounds = array<i64: 4, 40, 16>}, {pipeline_mode = #tpu.pipeline_mode<synchronous>, transform_indices = @transform_2, window_bounds = array<i64: 16, 128>}, {pipeline_mode = #tpu.pipeline_mode<synchronous>, transform_indices = @transform_3, window_bounds = array<i64: 16, 128>}, {transform_indices = @transform_4, window_bounds = array<i64: 40, 256>}]} {
    %c0 = arith.constant 0 : index
    %c0_0 = arith.constant 0 : index
    %c0_1 = arith.constant 0 : index
    %0 = vector.load %arg2[%c0, %c0_0, %c0_1] : memref<4x40x16xbf16, #tpu.memory_space<vmem>>, vector<1x40x16xbf16>
    %1 = vector.shape_cast %0 : vector<1x40x16xbf16> to vector<40x16xbf16>
    %2 = arith.extf %1 : vector<40x16xbf16> to vector<40x16xf32>
    %c1 = arith.constant 1 : index
    %c0_2 = arith.constant 0 : index
    %c0_3 = arith.constant 0 : index
    %3 = vector.load %arg2[%c1, %c0_2, %c0_3] : memref<4x40x16xbf16, #tpu.memory_space<vmem>>, vector<1x40x16xbf16>
    %4 = vector.shape_cast %3 : vector<1x40x16xbf16> to vector<40x16xbf16>
    %5 = arith.extf %4 : vector<40x16xbf16> to vector<40x16xf32>
    %c2 = arith.constant 2 : index
    %c0_4 = arith.constant 0 : index
    %c0_5 = arith.constant 0 : index
    %6 = vector.load %arg2[%c2, %c0_4, %c0_5] : memref<4x40x16xbf16, #tpu.memory_space<vmem>>, vector<1x40x16xbf16>
    %7 = vector.shape_cast %6 : vector<1x40x16xbf16> to vector<40x16xbf16>
    %8 = arith.extf %7 : vector<40x16xbf16> to vector<40x16xf32>
    %c3 = arith.constant 3 : index
    %c0_6 = arith.constant 0 : index
    %c0_7 = arith.constant 0 : index
    %9 = vector.load %arg2[%c3, %c0_6, %c0_7] : memref<4x40x16xbf16, #tpu.memory_space<vmem>>, vector<1x40x16xbf16>
    %10 = vector.shape_cast %9 : vector<1x40x16xbf16> to vector<40x16xbf16>
    %11 = arith.extf %10 : vector<40x16xbf16> to vector<40x16xf32>
    %12 = arith.addf %2, %5 : vector<40x16xf32>
    %13 = arith.addf %8, %11 : vector<40x16xf32>
    %14 = arith.addf %12, %13 : vector<40x16xf32>
    %cst = arith.constant 2.500000e-01 : f32
    %15 = vector.broadcast %cst : f32 to vector<40x16xf32>
    %16 = arith.mulf %14, %15 : vector<40x16xf32>
    %c0_8 = arith.constant 0 : index
    %c0_9 = arith.constant 0 : index
    %17 = vector.load %arg1[%c0_8, %c0_9] : memref<40x16xbf16, #tpu.memory_space<vmem>>, vector<40x16xbf16>
    %c0_10 = arith.constant 0 : index
    %c0_11 = arith.constant 0 : index
    %18 = vector.load %arg3[%c0_10, %c0_11] : memref<16x128xbf16, #tpu.memory_space<vmem>>, vector<16x128xbf16>
    %cst_12 = arith.constant dense<0.000000e+00> : vector<40x128xf32>
    %19 = tpu.matmul %17, %18, %cst_12 {dimension_numbers = #tpu.dot_dimension_numbers<[1], [0], [0], [1], [0, 0, 1, 1], [], []>} : vector<40x16xbf16>, vector<16x128xbf16>, vector<40x128xf32> -> vector<40x128xf32>
    %20 = arith.truncf %16 : vector<40x16xf32> to vector<40x16xbf16>
    %c0_13 = arith.constant 0 : index
    %c0_14 = arith.constant 0 : index
    %21 = vector.load %arg4[%c0_13, %c0_14] : memref<16x128xbf16, #tpu.memory_space<vmem>>, vector<16x128xbf16>
    %cst_15 = arith.constant dense<0.000000e+00> : vector<40x128xf32>
    %22 = tpu.matmul %20, %21, %cst_15 {dimension_numbers = #tpu.dot_dimension_numbers<[1], [0], [0], [1], [0, 0, 1, 1], [], []>} : vector<40x16xbf16>, vector<16x128xbf16>, vector<40x128xf32> -> vector<40x128xf32>
    %cst_16 = arith.constant 0.000000e+00 : f32
    %23 = vector.broadcast %cst_16 : f32 to vector<40x128xf32>
    %24 = arith.maximumf %19, %23 : vector<40x128xf32>
    %cst_17 = arith.constant 0.000000e+00 : f32
    %25 = vector.broadcast %cst_17 : f32 to vector<40x128xf32>
    %26 = arith.maximumf %22, %25 : vector<40x128xf32>
    %27 = arith.truncf %24 : vector<40x128xf32> to vector<40x128xbf16>
    %c0_18 = arith.constant 0 : index
    %c0_19 = arith.constant 0 : index
    %28 = vector.load %arg5[%c0_18, %c0_19] : memref<40x256xbf16, #tpu.memory_space<vmem>>, vector<40x128xbf16>
    tpu.vector_store %arg5[%c0_18, %c0_19], %27 {strides = array<i32>} : memref<40x256xbf16, #tpu.memory_space<vmem>>, vector<40x128xbf16>,
    %29 = arith.truncf %26 : vector<40x128xf32> to vector<40x128xbf16>
    %c0_20 = arith.constant 0 : index
    %c128 = arith.constant 128 : index
    %30 = vector.load %arg5[%c0_20, %c128] : memref<40x256xbf16, #tpu.memory_space<vmem>>, vector<40x128xbf16>
    tpu.vector_store %arg5[%c0_20, %c128], %29 {strides = array<i32>} : memref<40x256xbf16, #tpu.memory_space<vmem>>, vector<40x128xbf16>,
    return
  }
  func.func @transform_0(%arg0: i32) -> (i32, i32) {
    %c0_i32 = arith.constant 0 : i32
    %c0_i32_0 = arith.constant 0 : i32
    return %arg0, %c0_i32 : i32, i32
  }
  func.func @transform_1(%arg0: i32) -> (i32, i32, i32) {
    %c0_i32 = arith.constant 0 : i32
    %c0_i32_0 = arith.constant 0 : i32
    %c0_i32_1 = arith.constant 0 : i32
    return %c0_i32, %arg0, %c0_i32_0 : i32, i32, i32
  }
  func.func @transform_2(%arg0: i32) -> (i32, i32) {
    %c0_i32 = arith.constant 0 : i32
    %c0_i32_0 = arith.constant 0 : i32
    %c0_i32_1 = arith.constant 0 : i32
    return %c0_i32, %c0_i32_0 : i32, i32
  }
  func.func @transform_3(%arg0: i32) -> (i32, i32) {
    %c0_i32 = arith.constant 0 : i32
    %c0_i32_0 = arith.constant 0 : i32
    %c0_i32_1 = arith.constant 0 : i32
    return %c0_i32, %c0_i32_0 : i32, i32
  }
  func.func @transform_4(%arg0: i32) -> (i32, i32) {
    %c0_i32 = arith.constant 0 : i32
    %c0_i32_0 = arith.constant 0 : i32
    return %arg0, %c0_i32 : i32, i32
  }
}

</mosaic_0001>

<llo_original>
// kernel: tpu_custom_call.1
$region0: #{tpu_custom_call.1}
  #allocation0 [shape = 'u32[]', space=smem, size = 0x4, offset = 0x4, fixed_abs, tag = 'smem constant byte address 0x4 - core index']
  #allocation1 [shape = 'u32[144,128]{1,0:T(1,128)}', space=vmem, size = 0x12000, scoped, tag = 'internal scratch']
  %s0 = inlined_call_operand.vmem [shape: bf16[40,16], index: 0, kind: input, shape index: {}]
  %s1 = inlined_call_operand.vmem [shape: bf16[4,40,16], index: 1, kind: input, shape index: {}]
  %s2 = inlined_call_operand.vmem [shape: bf16[16,128], index: 2, kind: input, shape index: {}]
  %s3 = inlined_call_operand.vmem [shape: bf16[16,128], index: 3, kind: input, shape index: {}]
  %s4 = inlined_call_operand.hbm [shape: bf16[40,256], index: 4, kind: output, shape index: {}]
  %s5 = sld [smem:[#allocation0]]
  $region26: #{tpu_custom_call.1} parent=0
    _
  %s7 = ssub.s32 1, %s5
  %s8 = scalar_select 0, %s7, %s5
  $region1: #{tpu_custom_call.1} parent=0
    #allocation2 [shape = 'u8[20480]{0}', space=vmem, size = 0x5000, scoped, tag = 'output window, operand 0, single buffered']
    #allocation3 [shape = 's32[1]{0}', space=sflag, size = 0x4, scoped, tag = 'scoped memory for tpu_custom_call.1']
    %9 = vsyncpa [#allocation3], 0
    // Predicated region
    $region2: #{tpu_custom_call.1} parent=1 // pred_check
      _
    $region3: #{tpu_custom_call.1} parent=1 // pred_check_branch
      %11 = sbr.rel (0) target = $region5
    $region4: #{tpu_custom_call.1} parent=1 // pred_region
      _
    $region5: #{tpu_custom_call.1} parent=1 // pred_fallthru
      _
    // Predicated region
    $region6: #{tpu_custom_call.1} parent=1 // pred_check
      _
    $region7: #{tpu_custom_call.1} parent=1 // pred_check_branch
      %13 = sbr.rel (0) target = $region9
    $region8: #{tpu_custom_call.1} parent=1 // pred_region
      _
    $region9: #{tpu_custom_call.1} parent=1 // pred_fallthru
      _
    // Predicated region
    $region10: #{tpu_custom_call.1} parent=1 // pred_check
      _
    $region11: #{tpu_custom_call.1} parent=1 // pred_check_branch
      %15 = sbr.rel (0) target = $region13
    $region12: #{tpu_custom_call.1} parent=1 // pred_region
      _
    $region13: #{tpu_custom_call.1} parent=1 // pred_fallthru
      _
    // Predicated region
    $region14: #{tpu_custom_call.1} parent=1 // pred_check
      _
    $region15: #{tpu_custom_call.1} parent=1 // pred_check_branch
      %17 = sbr.rel (0) target = $region17
    $region16: #{tpu_custom_call.1} parent=1 // pred_region
      _
    $region17: #{tpu_custom_call.1} parent=1 // pred_fallthru
      _
    %v19 = vld [vmem:[%s1] sm:$0xf]
    %v20 = vld [vmem:[%s1 + $0x4] sm:$0xf]
    %v21 = vld [vmem:[%s1 + $0x8] sm:$0xf]
    %v22 = vld [vmem:[%s1 + $0xc] sm:$0xf]
    %v23 = vld [vmem:[%s1 + $0x10] sm:$0xf]
    %v24 = vunpack.c.l.bf16 %v19
    %v25 = vunpack.c.l.bf16 %v20
    %v26 = vunpack.c.l.bf16 %v21
    %v27 = vunpack.c.l.bf16 %v22
    %v28 = vunpack.c.l.bf16 %v23
    %s29 = scalar_lea.vmem %s1, 20
    %v30 = vld [vmem:[%s29] sm:$0xf]
    %v31 = vld [vmem:[%s29 + $0x4] sm:$0xf]
    %v32 = vld [vmem:[%s29 + $0x8] sm:$0xf]
    %v33 = vld [vmem:[%s29 + $0xc] sm:$0xf]
    %v34 = vld [vmem:[%s29 + $0x10] sm:$0xf]
    %v35 = vunpack.c.l.bf16 %v30
    %v36 = vunpack.c.l.bf16 %v31
    %v37 = vunpack.c.l.bf16 %v32
    %v38 = vunpack.c.l.bf16 %v33
    %v39 = vunpack.c.l.bf16 %v34
    %s40 = scalar_lea.vmem %s1, 40
    %v41 = vld [vmem:[%s40] sm:$0xf]
    %v42 = vld [vmem:[%s40 + $0x4] sm:$0xf]
    %v43 = vld [vmem:[%s40 + $0x8] sm:$0xf]
    %v44 = vld [vmem:[%s40 + $0xc] sm:$0xf]
    %v45 = vld [vmem:[%s40 + $0x10] sm:$0xf]
    %v46 = vunpack.c.l.bf16 %v41
    %v47 = vunpack.c.l.bf16 %v42
    %v48 = vunpack.c.l.bf16 %v43
    %v49 = vunpack.c.l.bf16 %v44
    %v50 = vunpack.c.l.bf16 %v45
    %s51 = scalar_lea.vmem %s1, 60
    %v52 = vld [vmem:[%s51] sm:$0xf]
    %v53 = vld [vmem:[%s51 + $0x4] sm:$0xf]
    %v54 = vld [vmem:[%s51 + $0x8] sm:$0xf]
    %v55 = vld [vmem:[%s51 + $0xc] sm:$0xf]
    %v56 = vld [vmem:[%s51 + $0x10] sm:$0xf]
    %v57 = vunpack.c.l.bf16 %v52
    %v58 = vunpack.c.l.bf16 %v53
    %v59 = vunpack.c.l.bf16 %v54
    %v60 = vunpack.c.l.bf16 %v55
    %v61 = vunpack.c.l.bf16 %v56
    %v62 = vadd.f32 %v24, %v35
    %v63 = vadd.f32 %v25, %v36
    %v64 = vadd.f32 %v26, %v37
    %v65 = vadd.f32 %v27, %v38
    %v66 = vadd.f32 %v28, %v39
    %v67 = vadd.f32 %v46, %v57
    %v68 = vadd.f32 %v47, %v58
    %v69 = vadd.f32 %v48, %v59
    %v70 = vadd.f32 %v49, %v60
    %v71 = vadd.f32 %v50, %v61
    %v72 = vadd.f32 %v62, %v67
    %v73 = vadd.f32 %v63, %v68
    %v74 = vadd.f32 %v64, %v69
    %v75 = vadd.f32 %v65, %v70
    %v76 = vadd.f32 %v66, %v71
    %v77 = vmul.f32 %v72, 0.25
    %v78 = vmul.f32 %v73, 0.25
    %v79 = vmul.f32 %v74, 0.25
    %v80 = vmul.f32 %v75, 0.25
    %v81 = vmul.f32 %v76, 0.25
    %v82 = vld [vmem:[%s0] sm:$0xf]
    %v83 = vld [vmem:[%s0 + $0x4] sm:$0xf]
    %v84 = vld [vmem:[%s0 + $0x8] sm:$0xf]
    %v85 = vld [vmem:[%s0 + $0xc] sm:$0xf]
    %v86 = vld [vmem:[%s0 + $0x10] sm:$0xf]
    %v87 = vld [vmem:[%s2] sm:$0xf]
    %v88 = vld [vmem:[%s2 + $0x4] sm:$0xf]
    %v94 = vunpack.c.l.b16 %v82
    %v95 = vunpack.c.l.b16 %v83
    %v96 = vunpack.c.l.b16 %v84
    %v97 = vunpack.c.l.b16 %v85
    %v98 = vunpack.c.l.b16 %v86
    %v99 = vpack.c.b16 %v95, %v94
    %v100 = vpack.c.b16 %v97, %v96
    %v101 = vpack.c.b16 %v98, %v98
    %v104 = vunpack.c.l.b16 %v87
    %v105 = vunpack.c.l.b16 %v88
    %v106 = vpack.c.b16 %v105, %v104
    %vm108 = vcmask 130048
    %v110 = vsel %vm108, %v99, 0
    %v113 = vsel %vm108, %v100, 0
    %v116 = vsel %vm108, %v101, 0
    %118 = vmatprep.subr.bf16.mxu0 0
    %119 = vmatpush1.bf16.msra.mxu0 %v106
    %120 = vmatprep.subr.bf16.mxu0 0
    %121 = vmatpush1.bf16.msra.mxu0 0
    %122 = vmatprep.subr.bf16.mxu0 0
    %123 = vmatpush1.bf16.msra.mxu0 0
    %124 = vmatprep.subr.bf16.mxu0 0
    %125 = vmatpush1.bf16.msra.mxu0 0
    %126 = vmatprep.subr.bf16.mxu0 0
    %127 = vmatpush1.bf16.msra.mxu0 0
    %128 = vmatprep.subr.bf16.mxu0 0
    %129 = vmatpush1.bf16.msra.mxu0 0
    %130 = vmatprep.subr.bf16.mxu0 0
    %131 = vmatpush1.bf16.msra.mxu0 0
    %132 = vmatprep.subr.bf16.mxu0 0
    %133 = vmatpush1.bf16.msra.mxu0 0
    %134 = vmatprep.subr.bf16.mxu0 0
    %135 = vmatpush1.bf16.msra.mxu0 0
    %136 = vmatprep.subr.bf16.mxu0 0
    %137 = vmatpush1.bf16.msra.mxu0 0
    %138 = vmatprep.subr.bf16.mxu0 0
    %139 = vmatpush1.bf16.msra.mxu0 0
    %140 = vmatprep.subr.bf16.mxu0 0
    %141 = vmatpush1.bf16.msra.mxu0 0
    %142 = vmatprep.subr.bf16.mxu0 0
    %143 = vmatpush1.bf16.msra.mxu0 0
    %144 = vmatprep.subr.bf16.mxu0 0
    %145 = vmatpush1.bf16.msra.mxu0 0
    %146 = vmatprep.subr.bf16.mxu0 0
    %147 = vmatpush1.bf16.msra.mxu0 0
    %148 = vmatprep.subr.bf16.mxu0 0
    %149 = vmatpush1.bf16.msra.mxu0 0
    %150 = vmatprep.mubr.bf16.mxu0 0
    %151 = vmatmul.mubr.bf16.gmra.mrb[0].mxu0 %v110
    %v152 = vpop.f32.mrb[0].mxu0
    %v153 = vadd.f32 0.0, %v152
    %v154 = vpop.f32.mrb[0].mxu0
    %v155 = vpop.f32.mrb[0].mxu0
    %v156 = vadd.f32 0.0, %v155
    %v157 = vpop.f32.mrb[0].mxu0
    %158 = vmatprep.mubr.bf16.mxu0 0
    %159 = vmatmul.mubr.bf16.gmra.mrb[0].mxu0 %v113
    %v160 = vpop.f32.mrb[0].mxu0
    %v161 = vadd.f32 0.0, %v160
    %v162 = vpop.f32.mrb[0].mxu0
    %v163 = vpop.f32.mrb[0].mxu0
    %v164 = vadd.f32 0.0, %v163
    %v165 = vpop.f32.mrb[0].mxu0
    %166 = vmatprep.mubr.bf16.mxu0 0
    %167 = vmatmul.mubr.bf16.gmra.mrb[0].mxu0 %v116
    %v168 = vpop.f32.mrb[0].mxu0
    %v169 = vadd.f32 0.0, %v168
    %v170 = vpop.f32.mrb[0].mxu0
    %v171 = vpop.f32.mrb[0].mxu0
    %v172 = vpop.f32.mrb[0].mxu0
    %173 = vdwg.mxu0
    %v174 = vpack.c.bf16 %v78, %v77
    %v175 = vpack.c.bf16 %v80, %v79
    %v176 = vpack.c.bf16 %v81, %v81
    %v177 = vld [vmem:[%s3] sm:$0xf]
    %v178 = vld [vmem:[%s3 + $0x4] sm:$0xf]
    %v181 = vunpack.c.l.b16 %v177
    %v182 = vunpack.c.l.b16 %v178
    %v183 = vpack.c.b16 %v182, %v181
    %v186 = vsel %vm108, %v174, 0
    %v189 = vsel %vm108, %v175, 0
    %v192 = vsel %vm108, %v176, 0
    %194 = vmatprep.subr.bf16.mxu0 0
    %195 = vmatpush1.bf16.msra.mxu0 %v183
    %196 = vmatprep.subr.bf16.mxu0 0
    %197 = vmatpush1.bf16.msra.mxu0 0
    %198 = vmatprep.subr.bf16.mxu0 0
    %199 = vmatpush1.bf16.msra.mxu0 0
    %200 = vmatprep.subr.bf16.mxu0 0
    %201 = vmatpush1.bf16.msra.mxu0 0
    %202 = vmatprep.subr.bf16.mxu0 0
    %203 = vmatpush1.bf16.msra.mxu0 0
    %204 = vmatprep.subr.bf16.mxu0 0
    %205 = vmatpush1.bf16.msra.mxu0 0
    %206 = vmatprep.subr.bf16.mxu0 0
    %207 = vmatpush1.bf16.msra.mxu0 0
    %208 = vmatprep.subr.bf16.mxu0 0
    %209 = vmatpush1.bf16.msra.mxu0 0
    %210 = vmatprep.subr.bf16.mxu0 0
    %211 = vmatpush1.bf16.msra.mxu0 0
    %212 = vmatprep.subr.bf16.mxu0 0
    %213 = vmatpush1.bf16.msra.mxu0 0
    %214 = vmatprep.subr.bf16.mxu0 0
    %215 = vmatpush1.bf16.msra.mxu0 0
    %216 = vmatprep.subr.bf16.mxu0 0
    %217 = vmatpush1.bf16.msra.mxu0 0
    %218 = vmatprep.subr.bf16.mxu0 0
    %219 = vmatpush1.bf16.msra.mxu0 0
    %220 = vmatprep.subr.bf16.mxu0 0
    %221 = vmatpush1.bf16.msra.mxu0 0
    %222 = vmatprep.subr.bf16.mxu0 0
    %223 = vmatpush1.bf16.msra.mxu0 0
    %224 = vmatprep.subr.bf16.mxu0 0
    %225 = vmatpush1.bf16.msra.mxu0 0
    %226 = vmatprep.mubr.bf16.mxu0 0
    %227 = vmatmul.mubr.bf16.gmra.mrb[0].mxu0 %v186
    %v228 = vpop.f32.mrb[0].mxu0
    %v229 = vadd.f32 0.0, %v228
    %v230 = vpop.f32.mrb[0].mxu0
    %v231 = vpop.f32.mrb[0].mxu0
    %v232 = vadd.f32 0.0, %v231
    %v233 = vpop.f32.mrb[0].mxu0
    %234 = vmatprep.mubr.bf16.mxu0 0
    %235 = vmatmul.mubr.bf16.gmra.mrb[0].mxu0 %v189
    %v236 = vpop.f32.mrb[0].mxu0
    %v237 = vadd.f32 0.0, %v236
    %v238 = vpop.f32.mrb[0].mxu0
    %v239 = vpop.f32.mrb[0].mxu0
    %v240 = vadd.f32 0.0, %v239
    %v241 = vpop.f32.mrb[0].mxu0
    %242 = vmatprep.mubr.bf16.mxu0 0
    %243 = vmatmul.mubr.bf16.gmra.mrb[0].mxu0 %v192
    %v244 = vpop.f32.mrb[0].mxu0
    %v245 = vadd.f32 0.0, %v244
    %v246 = vpop.f32.mrb[0].mxu0
    %v247 = vpop.f32.mrb[0].mxu0
    %v248 = vpop.f32.mrb[0].mxu0
    %249 = vdwg.mxu0
    %v250 = vmax.f32 %v153, 0.0
    %v251 = vmax.f32 %v156, 0.0
    %v252 = vmax.f32 %v161, 0.0
    %v253 = vmax.f32 %v164, 0.0
    %v254 = vmax.f32 %v169, 0.0
    %v255 = vmax.f32 %v229, 0.0
    %v256 = vmax.f32 %v232, 0.0
    %v257 = vmax.f32 %v237, 0.0
    %v258 = vmax.f32 %v240, 0.0
    %v259 = vmax.f32 %v245, 0.0
    %v260 = vpack.c.bf16 %v251, %v250
    %v261 = vpack.c.bf16 %v253, %v252
    %v262 = vpack.c.bf16 %v254, %v254
    %v266 = vunpack.c.l.b16 %v260
    %v267 = vunpack.c.h.b16 %v260
    %v268 = vunpack.c.l.b16 %v261
    %v269 = vunpack.c.h.b16 %v261
    %v270 = vunpack.c.l.b16 %v262
    %v271 = vpack.c.b16 %v266, %v266
    %v272 = vpack.c.b16 %v267, %v267
    %v273 = vpack.c.b16 %v268, %v268
    %v274 = vpack.c.b16 %v269, %v269
    %v275 = vpack.c.b16 %v270, %v270
    %281 = vst [vmem:[#allocation2] sm:$0xf] %v271
    %282 = vst [vmem:[#allocation2 + $0x8] sm:$0xf] %v272
    %283 = vst [vmem:[#allocation2 + $0x10] sm:$0xf] %v273
    %284 = vst [vmem:[#allocation2 + $0x18] sm:$0xf] %v274
    %285 = vst [vmem:[#allocation2 + $0x20] sm:$0xf] %v275
    %v286 = vpack.c.bf16 %v256, %v255
    %v287 = vpack.c.bf16 %v258, %v257
    %v288 = vpack.c.bf16 %v259, %v259
    %v292 = vunpack.c.l.b16 %v286
    %v293 = vunpack.c.h.b16 %v286
    %v294 = vunpack.c.l.b16 %v287
    %v295 = vunpack.c.h.b16 %v287
    %v296 = vunpack.c.l.b16 %v288
    %v297 = vpack.c.b16 %v292, %v292
    %v298 = vpack.c.b16 %v293, %v293
    %v299 = vpack.c.b16 %v294, %v294
    %v300 = vpack.c.b16 %v295, %v295
    %v301 = vpack.c.b16 %v296, %v296
    %307 = vst [vmem:[#allocation2 + $0x4] sm:$0xf] %v297
    %308 = vst [vmem:[#allocation2 + $0xc] sm:$0xf] %v298
    %309 = vst [vmem:[#allocation2 + $0x14] sm:$0xf] %v299
    %310 = vst [vmem:[#allocation2 + $0x1c] sm:$0xf] %v300
    %311 = vst [vmem:[#allocation2 + $0x24] sm:$0xf] %v301
    // Predicated region
    $region18: #{tpu_custom_call.1} parent=1 // pred_check
      _
    $region19: #{tpu_custom_call.1} parent=1 // pred_check_branch
      %313 = sbr.rel (0) target = $region21
    $region20: #{tpu_custom_call.1} parent=1 // pred_region
      %s315 = ssub.s32 640, 640
      %316 = vsyncadd [#allocation3], %s315
      %s317 = sshll.u32 [#allocation2], 4
      %s318 = int_to_ptr.vmem [resolvable:$true] %s317
      %323 = dma.vmem_to_hbm [thread:$0]  %s318, 640, %s4, [#allocation3], 128, 128, 8
    $region21: #{tpu_custom_call.1} parent=1 // pred_fallthru
      _
    // Predicated region
    $region22: #{tpu_custom_call.1} parent=1 // pred_check
      _
    $region23: #{tpu_custom_call.1} parent=1 // pred_check_branch
      %325 = sbr.rel (0) target = $region25
    $region24: #{tpu_custom_call.1} parent=1 // pred_region
      %326 = dma.done [#allocation3], 640
    $region25: #{tpu_custom_call.1} parent=1 // pred_fallthru
      _
    %327 = vsyncpa [#allocation3], 1

</llo_original>
